<compile_context>
chip_gen: v5e
topology: v5e:2x2
jax: 0.10.0
libtpu: 0.0.40
codegen_flags: <defaults>
</compile_context>

<pallas_src>
import math

import jax
import jax.numpy as jnp
from jax.experimental import pallas as pl
from jax.experimental.pallas import tpu as pltpu

_LANE = 128


# --------------------------------------------------------------------------
# VMEM accounting (tiled footprint, generation aware)
# --------------------------------------------------------------------------
def _round_up(x, m):
    return (x + m - 1) // m * m


def _sublanes(dtype):
    # sublane rows of one (sublane, 128) layout tile: f32 -> 8, bf16 -> 16, int8 -> 32
    item = jnp.dtype(dtype).itemsize
    return max(8, (4 // max(1, item)) * 8)


def _block_bytes(block_shape, dtype):
    """VMEM footprint of one block, including (sublane, lane) tile padding."""
    item = jnp.dtype(dtype).itemsize
    sl = _sublanes(dtype)
    lead = 1
    for d in block_shape[:-2]:
        lead *= int(d)
    r, c = int(block_shape[-2]), int(block_shape[-1])
    return lead * _round_up(r, sl) * _round_up(c, _LANE) * item


def _vmem_capacity_bytes():
    try:
        cap = int(getattr(pltpu.get_tpu_info(), "vmem_capacity_bytes", 0))
        if cap > 0:
            return cap
    except Exception:
        pass
    return 64 * 1024 * 1024  # conservative: v7x per-TensorCore VMEM


_PAIR_BUDGET = None


def _default_pair_budget():
    """Single-buffered (in-block + out-block) byte budget.

    Pallas double-buffers both blocks, so the resident working set is ~2x this:
    ~42 MiB on v7x (64 MiB VMEM), ~64 MiB on v5e/v6e (128 MiB VMEM).
    """
    global _PAIR_BUDGET
    if _PAIR_BUDGET is None:
        _PAIR_BUDGET = min(_vmem_capacity_bytes() // 3, 32 * 1024 * 1024)
    return _PAIR_BUDGET


def _vmem_limit_bytes(pair_bytes):
    cap = _vmem_capacity_bytes()
    need = 2 * pair_bytes + (4 << 20)  # double-buffered blocks + slack
    return int(min(max(32 << 20, need), cap - (8 << 20)))


def _compiler_params(grid_rank, pair_bytes):
    return pltpu.CompilerParams(
        dimension_semantics=("parallel",) * grid_rank,
        vmem_limit_bytes=_vmem_limit_bytes(pair_bytes))


# --------------------------------------------------------------------------
# tile choosers
# --------------------------------------------------------------------------
def _choose_flat_tile_nc(nc, L_in, L_out, dtype, budget):
    """Rows per block for the flattened (nc, H*W) layout, or None if even one
    sublane-group of rows does not fit the budget (caller falls back to the
    (H, W)-layout path, which can tile H)."""
    sl = _sublanes(dtype)
    per_group = _block_bytes((sl, L_in), dtype) + _block_bytes((sl, L_out), dtype)
    if per_group > budget:
        return None
    groups = max(1, budget // per_group)
    return int(min(nc, groups * sl))


def _choose_2d_tiles(nc, H_in, W_in, H_grid, W_out, dtype, budget):
    """Returns (tile_nc, tile_h); tile_h is None when no H tiling is needed."""
    sl = _sublanes(dtype)
    plane_pair = (_block_bytes((1, H_in, W_in), dtype)
                  + _block_bytes((1, H_grid, W_out), dtype))
    if plane_pair <= budget:
        return int(max(1, min(nc, budget // plane_pair))), None
    # plane pair too big: tile the output H axis in sublane-multiple chunks
    row_group = (_block_bytes((1, sl, W_in), dtype)
                 + _block_bytes((1, sl, W_out), dtype))
    groups = max(1, budget // row_group)
    tile_h = int(min(_round_up(H_grid, sl), groups * sl))
    return 1, tile_h


# --------------------------------------------------------------------------
# flattened (lane-dense) kernels: used when pad_W == 0
# --------------------------------------------------------------------------
def _pad_flat_call(x2d, L_in, L_out, tile_nc):
    nc = int(x2d.shape[0])
    dtype = x2d.dtype
    pair = _block_bytes((tile_nc, L_in), dtype) + _block_bytes((tile_nc, L_out), dtype)

    def kernel(x_ref, o_ref):
        # valid region written once; only the (contiguous) pad tail is zeroed
        o_ref[:, :L_in] = x_ref[...]
        o_ref[:, L_in:] = jnp.zeros((o_ref.shape[0], L_out - L_in), o_ref.dtype)

    return pl.pallas_call(
        kernel,
        out_shape=jax.ShapeDtypeStruct((nc, L_out), dtype),
        grid_spec=pltpu.PrefetchScalarGridSpec(
            num_scalar_prefetch=0,
            grid=(pl.cdiv(nc, tile_nc),),
            in_specs=[pl.BlockSpec((tile_nc, L_in), lambda i: (i, 0))],
            out_specs=pl.BlockSpec((tile_nc, L_out), lambda i: (i, 0)),
        ),
        compiler_params=_compiler_params(1, pair),
    )(x2d)


def _crop_flat_call(x2d, L_out, tile_nc):
    nc, L_in = int(x2d.shape[0]), int(x2d.shape[1])
    dtype = x2d.dtype
    # read only the lane-aligned prefix covering the kept elements (skips most
    # of the bottom pad rows instead of streaming them in and discarding)
    L_read = _round_up(L_out, _LANE)
    if L_read > L_in:
        L_read = L_in
    pair = _block_bytes((tile_nc, L_read), dtype) + _block_bytes((tile_nc, L_out), dtype)

    def kernel(x_ref, o_ref):
        o_ref[...] = x_ref[:, :L_out]

    return pl.pallas_call(
        kernel,
        out_shape=jax.ShapeDtypeStruct((nc, L_out), dtype),
        grid_spec=pltpu.PrefetchScalarGridSpec(
            num_scalar_prefetch=0,
            grid=(pl.cdiv(nc, tile_nc),),
            in_specs=[pl.BlockSpec((tile_nc, L_read), lambda i: (i, 0))],
            out_specs=pl.BlockSpec((tile_nc, L_out), lambda i: (i, 0)),
        ),
        compiler_params=_compiler_params(1, pair),
    )(x2d)


# --------------------------------------------------------------------------
# (H, W)-layout kernels: used when pad_W > 0 (or the flat path doesn't fit)
# --------------------------------------------------------------------------
def _pad_2d_full_call(x3d, H_pad, W_pad, tile_nc):
    nc, H, W = (int(d) for d in x3d.shape)
    dtype = x3d.dtype
    pad_H, pad_W = H_pad - H, W_pad - W
    pair = (_block_bytes((tile_nc, H, W), dtype)
            + _block_bytes((tile_nc, H_pad, W_pad), dtype))

    def kernel(x_ref, o_ref):
        tnc = o_ref.shape[0]
        o_ref[:, :H, :W] = x_ref[...]
        if pad_H > 0:
            o_ref[:, H:, :] = jnp.zeros((tnc, pad_H, W_pad), o_ref.dtype)
        if pad_W > 0:
            o_ref[:, :H, W:] = jnp.zeros((tnc, H, pad_W), o_ref.dtype)

    return pl.pallas_call(
        kernel,
        out_shape=jax.ShapeDtypeStruct((nc, H_pad, W_pad), dtype),
        grid_spec=pltpu.PrefetchScalarGridSpec(
            num_scalar_prefetch=0,
            grid=(pl.cdiv(nc, tile_nc),),
            in_specs=[pl.BlockSpec((tile_nc, H, W), lambda i: (i, 0, 0))],
            out_specs=pl.BlockSpec((tile_nc, H_pad, W_pad), lambda i: (i, 0, 0)),
        ),
        compiler_params=_compiler_params(1, pair),
    )(x3d)


def _pad_2d_htiled_call(x3d, H_pad, W_pad, tile_h):
    nc, H, W = (int(d) for d in x3d.shape)
    dtype = x3d.dtype
    pad_W = W_pad - W
    n_h = pl.cdiv(H_pad, tile_h)
    last_in_h = max(0, pl.cdiv(H, tile_h) - 1)
    pair = (_block_bytes((1, tile_h, W), dtype)
            + _block_bytes((1, tile_h, W_pad), dtype))

    def in_map(i, h):
        # blocks fully inside the bottom pad region clamp to the last valid
        # input block; their contents are masked to zero in the kernel body
        return (i, jnp.minimum(h, last_in_h), 0)

    def kernel(x_ref, o_ref):
        h = pl.program_id(1)
        tnc, th, _ = o_ref.shape
        row = h * th + jax.lax.broadcasted_iota(jnp.int32, (tnc, th, W), 1)
        x = x_ref[...]
        o_ref[:, :, :W] = jnp.where(row < H, x, jnp.zeros_like(x))
        if pad_W > 0:
            o_ref[:, :, W:] = jnp.zeros((tnc, th, pad_W), o_ref.dtype)

    return pl.pallas_call(
        kernel,
        out_shape=jax.ShapeDtypeStruct((nc, H_pad, W_pad), dtype),
        grid_spec=pltpu.PrefetchScalarGridSpec(
            num_scalar_prefetch=0,
            grid=(nc, n_h),
            in_specs=[pl.BlockSpec((1, tile_h, W), in_map)],
            out_specs=pl.BlockSpec((1, tile_h, W_pad), lambda i, h: (i, h, 0)),
        ),
        compiler_params=_compiler_params(2, pair),
    )(x3d)


def _crop_2d_full_call(x3d, H_out, W_out, tile_nc):
    nc, H_in, W_in = (int(d) for d in x3d.shape)
    dtype = x3d.dtype
    # read only a sublane-aligned prefix of rows (skip most of the pad rows)
    H_read = _round_up(H_out, _sublanes(dtype))
    if H_read > H_in:
        H_read = H_in
    pair = (_block_bytes((tile_nc, H_read, W_in), dtype)
            + _block_bytes((tile_nc, H_out, W_out), dtype))

    def kernel(x_ref, o_ref):
        o_ref[...] = x_ref[:, :H_out, :W_out]

    return pl.pallas_call(
        kernel,
        out_shape=jax.ShapeDtypeStruct((nc, H_out, W_out), dtype),
        grid_spec=pltpu.PrefetchScalarGridSpec(
            num_scalar_prefetch=0,
            grid=(pl.cdiv(nc, tile_nc),),
            in_specs=[pl.BlockSpec((tile_nc, H_read, W_in), lambda i: (i, 0, 0))],
            out_specs=pl.BlockSpec((tile_nc, H_out, W_out), lambda i: (i, 0, 0)),
        ),
        compiler_params=_compiler_params(1, pair),
    )(x3d)


def _crop_2d_htiled_call(x3d, H_out, W_out, tile_h):
    nc, H_in, W_in = (int(d) for d in x3d.shape)
    dtype = x3d.dtype
    n_h = pl.cdiv(H_out, tile_h)
    pair = (_block_bytes((1, tile_h, W_in), dtype)
            + _block_bytes((1, tile_h, W_out), dtype))

    def kernel(x_ref, o_ref):
        o_ref[...] = x_ref[:, :, :W_out]

    return pl.pallas_call(
        kernel,
        out_shape=jax.ShapeDtypeStruct((nc, H_out, W_out), dtype),
        grid_spec=pltpu.PrefetchScalarGridSpec(
            num_scalar_prefetch=0,
            grid=(nc, n_h),
            in_specs=[pl.BlockSpec((1, tile_h, W_in), lambda i, h: (i, h, 0))],
            out_specs=pl.BlockSpec((1, tile_h, W_out), lambda i, h: (i, h, 0)),
        ),
        compiler_params=_compiler_params(2, pair),
    )(x3d)


# --------------------------------------------------------------------------
# module
# --------------------------------------------------------------------------
class RestModelPallas:
    """JAX/Pallas port of RestModel's pad/crop machinery."""

    def __init__(self, model=None, physics=None, device=None, pad_multiple=1,
                 physics_generator=None, apply_adjoint=False, stochastic=True,
                 average_gradient_steps=1, model_name=None):
        # `model` / `physics` are opaque user-supplied modules in the original;
        # they carry no defined computation here.
        self.model = model
        self.physics = physics
        self.padding_factor = pad_multiple
        self.physics_generator = physics_generator
        self.apply_adjoint = False          # reference hard-codes False
        self.stochastic = stochastic
        self.average_gradient_steps = average_gradient_steps
        self.model_name = model_name

    # ---------------- pad ----------------
    def pad(self, x, *, max_block_pair_bytes=None):
        if self.padding_factor == 1:
            return x, None, None

        pf = self.padding_factor
        H, W = int(x.shape[-2]), int(x.shape[-1])
        H_pad = int(math.ceil(H / pf) * pf)
        W_pad = int(math.ceil(W / pf) * pf)
        pad_H, pad_W = H_pad - H, W_pad - W

        # already aligned: skip the HBM round trip entirely
        if pad_H == 0 and pad_W == 0:
            return x, 0, 0

        lead = x.shape[:-2]
        nc = int(math.prod(lead)) if lead else 1
        budget = int(max_block_pair_bytes or _default_pair_budget())
        dtype = x.dtype

        if pad_W == 0:
            # lane-dense path: the pad rows are contiguous in the flattened
            # (nc, H*W) view, so the store is one long run instead of W-wide strips
            L_in, L_out = H * W, H_pad * W
            tile_nc = _choose_flat_tile_nc(nc, L_in, L_out, dtype, budget)
            if tile_nc is not None:
                y = _pad_flat_call(x.reshape((nc, L_in)), L_in, L_out, tile_nc)
                return y.reshape(lead + (H_pad, W_pad)), pad_H, pad_W

        x3d = x.reshape((nc, H, W))
        tile_nc, tile_h = _choose_2d_tiles(nc, H, W, H_pad, W_pad, dtype, budget)
        if tile_h is None or tile_h >= H_pad:
            y = _pad_2d_full_call(x3d, H_pad, W_pad, tile_nc)
        else:
            y = _pad_2d_htiled_call(x3d, H_pad, W_pad, tile_h)
        return y.reshape(lead + (H_pad, W_pad)), pad_H, pad_W

    # ---------------- crop ----------------
    def crop(self, x, pad_H, pad_W, *, max_block_pair_bytes=None):
        if self.padding_factor == 1:
            return x
        pad_H = 0 if pad_H is None else int(pad_H)
        pad_W = 0 if pad_W is None else int(pad_W)
        if pad_H == 0 and pad_W == 0:
            return x

        H, W = int(x.shape[-2]), int(x.shape[-1])
        H_out, W_out = H - pad_H, W - pad_W
        lead = x.shape[:-2]
        nc = int(math.prod(lead)) if lead else 1
        budget = int(max_block_pair_bytes or _default_pair_budget())
        dtype = x.dtype

        if pad_W == 0:
            L_in, L_out = H * W, H_out * W
            tile_nc = _choose_flat_tile_nc(nc, L_in, L_out, dtype, budget)
            if tile_nc is not None:
                y = _crop_flat_call(x.reshape((nc, L_in)), L_out, tile_nc)
                return y.reshape(lead + (H_out, W_out))

        x3d = x.reshape((nc, H, W))
        tile_nc, tile_h = _choose_2d_tiles(nc, H, W, H_out, W_out, dtype, budget)
        if tile_h is None or tile_h >= H_out:
            y = _crop_2d_full_call(x3d, H_out, W_out, tile_nc)
        else:
            y = _crop_2d_htiled_call(x3d, H_out, W_out, tile_h)
        return y.reshape(lead + (H_out, W_out))

    def forward(self, x):
        # TODO(synk): reference forward() raises NotImplementedError; there is
        # no computation to translate, so we expose pad/crop only.
        raise NotImplementedError()


# --------------------------------------------------------------------------
# self-test
# --------------------------------------------------------------------------
if __name__ == "__main__":
    rest8 = RestModelPallas(pad_multiple=8)

    # Case A: pad_W == 0 -> lane-dense flattened kernels (13x16 -> 16x16).
    xa = jax.random.normal(jax.random.PRNGKey(0), (2, 4, 13, 16), dtype=jnp.float32)
    pa, ph_a, pw_a = rest8.pad(xa)
    pa = jax.block_until_ready(pa)
    assert (ph_a, pw_a) == (3, 0)
    assert pa.shape == (2, 4, 16, 16)
    assert bool(jnp.array_equal(pa, jnp.pad(xa, ((0, 0), (0, 0), (0, 3), (0, 0))))), \
        "flat pad mismatch"
    ca = jax.block_until_ready(rest8.crop(pa, ph_a, pw_a))
    assert bool(jnp.array_equal(ca, xa)), "flat crop mismatch"

    # Case B: pad_W > 0 -> (H, W)-layout kernels (13x13 -> 16x16).
    xb = jax.random.normal(jax.random.PRNGKey(1), (2, 4, 13, 13), dtype=jnp.float32)
    pb, ph_b, pw_b = rest8.pad(xb)
    pb = jax.block_until_ready(pb)
    assert (ph_b, pw_b) == (3, 3)
    assert bool(jnp.array_equal(pb, jnp.pad(xb, ((0, 0), (0, 0), (0, 3), (0, 3))))), \
        "2d pad mismatch"
    cb = jax.block_until_ready(rest8.crop(pb, ph_b, pw_b))
    assert bool(jnp.array_equal(cb, xb)), "2d crop mismatch"

    # Case C: already aligned -> no kernel launch, pure pass-through.
    xc = jax.random.normal(jax.random.PRNGKey(2), (2, 4, 16, 16), dtype=jnp.float32)
    pc, ph_c, pw_c = rest8.pad(xc)
    assert ph_c == 0 and pw_c == 0
    assert bool(jnp.array_equal(pc, xc))
    assert bool(jnp.array_equal(rest8.crop(pc, ph_c, pw_c), xc))

    # Case D: forced-tiny VMEM budget -> H-tiled (H, W) path with partial last
    # blocks and a clamped out-of-range input block (15x13 -> 24x24, pf=12).
    rest12 = RestModelPallas(pad_multiple=12)
    xd = jax.random.normal(jax.random.PRNGKey(3), (1, 2, 15, 13), dtype=jnp.float32)
    pd, ph_d, pw_d = rest12.pad(xd, max_block_pair_bytes=8192)
    pd = jax.block_until_ready(pd)
    assert (ph_d, pw_d) == (9, 11)
    assert bool(jnp.array_equal(pd, jnp.pad(xd, ((0, 0), (0, 0), (0, 9), (0, 11))))), \
        "h-tiled pad mismatch"
    cd = jax.block_until_ready(rest12.crop(pd, ph_d, pw_d, max_block_pair_bytes=8192))
    assert bool(jnp.array_equal(cd, xd)), "h-tiled crop mismatch"

    # Case E: pad_W == 0 but flattened blocks over budget -> rerouted to the
    # H-tiled (H, W) path (15x16 -> 16x16 with 8-row tiles).
    xe = jax.random.normal(jax.random.PRNGKey(4), (1, 2, 15, 16), dtype=jnp.float32)
    pe, ph_e, pw_e = rest8.pad(xe, max_block_pair_bytes=8192)
    pe = jax.block_until_ready(pe)
    assert (ph_e, pw_e) == (1, 0)
    assert bool(jnp.array_equal(pe, jnp.pad(xe, ((0, 0), (0, 0), (0, 1), (0, 0))))), \
        "rerouted pad mismatch"
    ce = jax.block_until_ready(rest8.crop(pe, ph_e, pw_e, max_block_pair_bytes=8192))
    assert bool(jnp.array_equal(ce, xe)), "rerouted crop mismatch"

    print("KERNEL_OK")
</pallas_src>

<mosaic_0001>
module attributes {stable_mosaic.version = 11 : i64} {
  func.func @kernel(%arg0: i32, %arg1: memref<8x208xf32, #tpu.memory_space<vmem>>, %arg2: memref<8x256xf32, #tpu.memory_space<vmem>>) attributes {dimension_semantics = [#tpu.dimension_semantics<parallel>], iteration_bounds = array<i64: 1>, scalar_prefetch = 0 : i64, scratch_operands = 0 : i64, tpu.core_type = #tpu.core_type<tc>, window_params = [{transform_indices = @transform_0, window_bounds = array<i64: 8, 208>}, {transform_indices = @transform_1, window_bounds = array<i64: 8, 256>}]} {
    %c0 = arith.constant 0 : index
    %c0_0 = arith.constant 0 : index
    %0 = vector.load %arg1[%c0, %c0_0] : memref<8x208xf32, #tpu.memory_space<vmem>>, vector<8x208xf32>
    %c0_1 = arith.constant 0 : index
    %c0_2 = arith.constant 0 : index
    %1 = vector.load %arg2[%c0_1, %c0_2] : memref<8x256xf32, #tpu.memory_space<vmem>>, vector<8x208xf32>
    tpu.vector_store %arg2[%c0_1, %c0_2], %0 {strides = array<i32>} : memref<8x256xf32, #tpu.memory_space<vmem>>, vector<8x208xf32>,
    %cst = arith.constant 0.000000e+00 : f32
    %2 = vector.broadcast %cst : f32 to vector<8x48xf32>
    %c0_3 = arith.constant 0 : index
    %c208 = arith.constant 208 : index
    %3 = vector.load %arg2[%c0_3, %c208] : memref<8x256xf32, #tpu.memory_space<vmem>>, vector<8x48xf32>
    tpu.vector_store %arg2[%c0_3, %c208], %2 {strides = array<i32>} : memref<8x256xf32, #tpu.memory_space<vmem>>, vector<8x48xf32>,
    return
  }
  func.func @transform_0(%arg0: i32) -> (i32, i32) {
    %c0_i32 = arith.constant 0 : i32
    %c0_i32_0 = arith.constant 0 : i32
    return %arg0, %c0_i32 : i32, i32
  }
  func.func @transform_1(%arg0: i32) -> (i32, i32) {
    %c0_i32 = arith.constant 0 : i32
    %c0_i32_0 = arith.constant 0 : i32
    return %arg0, %c0_i32 : i32, i32
  }
}

</mosaic_0001>

<llo_original>
// kernel: tpu_custom_call.1
$region0: #{tpu_custom_call.1}
  #allocation0 [shape = 'u32[]', space=smem, size = 0x4, offset = 0x4, fixed_abs, tag = 'smem constant byte address 0x4 - core index']
  #allocation1 [shape = 'u32[72,128]{1,0:T(1,128)}', space=vmem, size = 0x9000, scoped, tag = 'internal scratch']
  %s0 = inlined_call_operand.hbm [shape: f32[8,208], index: 0, kind: input, shape index: {}]
  %s1 = inlined_call_operand.hbm [shape: f32[8,256], index: 1, kind: output, shape index: {}]
  %s2 = sld [smem:[#allocation0]]
  $region18: #{tpu_custom_call.1} parent=0
    _
  %s4 = ssub.s32 1, %s2
  %s5 = scalar_select 0, %s4, %s2
  $region1: #{tpu_custom_call.1} parent=0
    #allocation2 [shape = 'u8[8192]{0}', space=vmem, size = 0x2000, scoped, tag = 'input window, operand 0, single buffered']
    #allocation3 [shape = 's32[1]{0}', space=sflag, size = 0x4, scoped, tag = 'scoped memory for tpu_custom_call.1']
    #allocation4 [shape = 's32[1]{0}', space=sflag, size = 0x4, scoped, tag = 'scoped memory for tpu_custom_call.1']
    #allocation5 [shape = 'u8[8192]{0}', space=vmem, size = 0x2000, scoped, tag = 'output window, operand 0, single buffered']
    %6 = vsyncpa [#allocation3], 0
    %7 = vsyncpa [#allocation4], 0
    // Predicated region
    $region2: #{tpu_custom_call.1} parent=1 // pred_check
      _
    $region3: #{tpu_custom_call.1} parent=1 // pred_check_branch
      %9 = sbr.rel (0) target = $region5
    $region4: #{tpu_custom_call.1} parent=1 // pred_region
      %11 = vsyncadd [#allocation3], 0
      %s13 = sshll.u32 %s0, 4
      %s14 = int_to_ptr.hbm [resolvable:$true] %s13
      %s15 = sshll.u32 [#allocation2], 4
      %s16 = int_to_ptr.vmem [resolvable:$true] %s15
      %18 = dma.hbm_to_vmem [thread:$0]  %s14, 256, %s16, [#allocation3]
    $region5: #{tpu_custom_call.1} parent=1 // pred_fallthru
      _
    // Predicated region
    $region6: #{tpu_custom_call.1} parent=1 // pred_check
      _
    $region7: #{tpu_custom_call.1} parent=1 // pred_check_branch
      %20 = sbr.rel (0) target = $region9
    $region8: #{tpu_custom_call.1} parent=1 // pred_region
      %22 = dma.done [#allocation3], 256
    $region9: #{tpu_custom_call.1} parent=1 // pred_fallthru
      _
    %v23 = vld [vmem:[#allocation2] sm:$0xff]
    %v24 = vld [vmem:[#allocation2 + $0x8] sm:$0xff]
    %25 = vst [vmem:[#allocation5] sm:$0xff] %v23
    %vm26 = vcmask 654336
    %27 = vst.msk [vmem:[#allocation5 + $0x8] sm:$0xff] %vm26, %v24
    %vm28 = vcmask 1048192
    %29 = vst.msk [vmem:[#allocation5 + $0x8] sm:$0xff] %vm28, 0.0
    // Predicated region
    $region10: #{tpu_custom_call.1} parent=1 // pred_check
      _
    $region11: #{tpu_custom_call.1} parent=1 // pred_check_branch
      %31 = sbr.rel (0) target = $region13
    $region12: #{tpu_custom_call.1} parent=1 // pred_region
      %33 = vsyncadd [#allocation4], 0
      %s35 = sshll.u32 [#allocation5], 4
      %s36 = int_to_ptr.vmem [resolvable:$true] %s35
      %s37 = sshll.u32 %s1, 4
      %s38 = int_to_ptr.hbm [resolvable:$true] %s37
      %40 = dma.vmem_to_hbm [thread:$0]  %s36, 256, %s38, [#allocation4]
    $region13: #{tpu_custom_call.1} parent=1 // pred_fallthru
      _
    // Predicated region
    $region14: #{tpu_custom_call.1} parent=1 // pred_check
      _
    $region15: #{tpu_custom_call.1} parent=1 // pred_check_branch
      %42 = sbr.rel (0) target = $region17
    $region16: #{tpu_custom_call.1} parent=1 // pred_region
      %44 = dma.done [#allocation4], 256
    $region17: #{tpu_custom_call.1} parent=1 // pred_fallthru
      _
    %45 = vsyncpa [#allocation3], 1
    %46 = vsyncpa [#allocation4], 1

</llo_original>
